<compile_context>
chip_gen: v5e
topology: v5e:2x2
jax: 0.10.0
libtpu: 0.0.40
codegen_flags: <defaults>
</compile_context>

<pallas_src>
import jax
import jax.numpy as jnp
from jax import lax
from jax.experimental import pallas as pl
from jax.experimental.pallas import tpu as pltpu

_SUBLANE = 8  # f32 sublane packing: batch tile must be a multiple of 8


def _round_up(x, m):
    return ((x + m - 1) // m) * m


def _mlp_kernel(x_ref, w1_ref, b1_ref, w2_ref, b2_ref, o_ref):
    # hidden = tanh(x @ W1 + b1)   -- (tb, in) @ (in, 64) on the MXU, f32 acc
    h = jnp.tanh(
        jnp.dot(
            x_ref[...], w1_ref[...],
            preferred_element_type=jnp.float32,
            precision=lax.Precision.HIGHEST,
        )
        + b1_ref[...]
    )
    # q = hidden @ W2 + b2         -- (tb, 64) @ (64, out); narrow masked store
    o_ref[...] = (
        jnp.dot(
            h, w2_ref[...],
            preferred_element_type=jnp.float32,
            precision=lax.Precision.HIGHEST,
        )
        + b2_ref[...]
    ).astype(o_ref.dtype)


def state_to_qvalues(obs, w1, b1, w2, b2, *, block_b=4096,
                     xla_fast_path_max_batch=0):
    """obs: (B, in_features) f32 -> (B, out_features) f32.

    w1: (in_features, hidden), b1: (1, hidden)
    w2: (hidden, out_features), b2: (1, out_features)
    """
    B, in_features = obs.shape
    out_features = w2.shape[1]

    # Optional fast path for tiny serving batches (B of a few rows): a fused
    # XLA MLP beats any pallas_call launch.  Disabled by default so the Pallas
    # path is always exercised here.
    if B <= xla_fast_path_max_batch:
        h = jnp.tanh(jnp.dot(obs, w1, precision=lax.Precision.HIGHEST) + b1)
        return jnp.dot(h, w2, precision=lax.Precision.HIGHEST) + b2

    # --- Batch tiling: ragged grid, no padding / copies of obs. -------------
    num_tiles = pl.cdiv(B, block_b)
    if B >= 2 * _SUBLANE:
        # Ensure >=2 grid steps so the "parallel" axis can split across the
        # two v7x TensorCores (no-op on single-TC v5e/v6e).
        num_tiles = max(num_tiles, 2)
    tb = _round_up(pl.cdiv(B, num_tiles), _SUBLANE)
    grid = (pl.cdiv(B, tb),)

    # Weights/biases: full-extent blocks with a constant index_map -> fetched
    # once and kept VMEM-resident across all grid steps.
    resident = lambda shape: pl.BlockSpec(shape, lambda i: (0, 0))

    return pl.pallas_call(
        _mlp_kernel,
        out_shape=jax.ShapeDtypeStruct((B, out_features), jnp.float32),
        grid=grid,
        in_specs=[
            pl.BlockSpec((tb, in_features), lambda i: (i, 0)),  # streamed obs
            resident(w1.shape),
            resident(b1.shape),
            resident(w2.shape),
            resident(b2.shape),
        ],
        # Last block dim equals the full array dim -> legal; last partial batch
        # tile is masked on store.
        out_specs=pl.BlockSpec((tb, out_features), lambda i: (i, 0)),
        compiler_params=pltpu.CompilerParams(
            dimension_semantics=("parallel",),  # 2-TC sharding on v7x
        ),
    )(obs, w1, b1, w2, b2)


def init_params(key, in_features, out_features, hidden_features=64):
    """Mirror torch.nn.Linear default init: U[-1/sqrt(fan_in), +1/sqrt(fan_in)]."""
    k1, k2, k3, k4 = jax.random.split(key, 4)
    bound1 = 1.0 / jnp.sqrt(in_features)
    bound2 = 1.0 / jnp.sqrt(hidden_features)
    w1 = jax.random.uniform(k1, (in_features, hidden_features), jnp.float32, -bound1, bound1)
    b1 = jax.random.uniform(k2, (1, hidden_features), jnp.float32, -bound1, bound1)
    w2 = jax.random.uniform(k3, (hidden_features, out_features), jnp.float32, -bound2, bound2)
    b2 = jax.random.uniform(k4, (1, out_features), jnp.float32, -bound2, bound2)
    return w1, b1, w2, b2


def _reference(obs, w1, b1, w2, b2):
    h = jnp.tanh(jnp.dot(obs, w1, precision=lax.Precision.HIGHEST) + b1)
    return jnp.dot(h, w2, precision=lax.Precision.HIGHEST) + b2


if __name__ == "__main__":
    # LunarLander-style shapes: obs dim 8, 4 discrete actions, small batch.
    B, IN_FEATURES, OUT_FEATURES = 2, 8, 4

    key = jax.random.PRNGKey(0)
    k_obs, k_params = jax.random.split(key)
    obs = jax.random.normal(k_obs, (B, IN_FEATURES), jnp.float32)
    w1, b1, w2, b2 = init_params(k_params, IN_FEATURES, OUT_FEATURES)

    q = state_to_qvalues(obs, w1, b1, w2, b2)
    jax.block_until_ready(q)

    ref = _reference(obs, w1, b1, w2, b2)
    assert q.shape == (B, OUT_FEATURES)
    assert jnp.allclose(q, ref, atol=1e-5, rtol=1e-5)

    # Also exercise a larger, non-multiple-of-tile batch to validate the
    # ragged multi-step grid path (2 tiles, masked last tile).
    B2 = 4097
    obs2 = jax.random.normal(jax.random.PRNGKey(1), (B2, IN_FEATURES), jnp.float32)
    q2 = state_to_qvalues(obs2, w1, b1, w2, b2)
    jax.block_until_ready(q2)
    ref2 = _reference(obs2, w1, b1, w2, b2)
    assert q2.shape == (B2, OUT_FEATURES)
    assert jnp.allclose(q2, ref2, atol=1e-5, rtol=1e-5)

    print("KERNEL_OK")
</pallas_src>

<mosaic_0001>
module attributes {stable_mosaic.version = 11 : i64} {
  func.func @_mlp_kernel(%arg0: i32, %arg1: memref<8x8xf32, #tpu.memory_space<vmem>>, %arg2: memref<8x64xf32, #tpu.memory_space<vmem>>, %arg3: memref<1x64xf32, #tpu.memory_space<vmem>>, %arg4: memref<64x4xf32, #tpu.memory_space<vmem>>, %arg5: memref<1x4xf32, #tpu.memory_space<vmem>>, %arg6: memref<8x4xf32, #tpu.memory_space<vmem>>) attributes {dimension_semantics = [#tpu.dimension_semantics<parallel>], iteration_bounds = array<i64: 1>, scalar_prefetch = 0 : i64, scratch_operands = 0 : i64, tpu.core_type = #tpu.core_type<tc>, window_params = [{transform_indices = @transform_0, window_bounds = array<i64: 8, 8>}, {pipeline_mode = #tpu.pipeline_mode<synchronous>, transform_indices = @transform_1, window_bounds = array<i64: 8, 64>}, {pipeline_mode = #tpu.pipeline_mode<synchronous>, transform_indices = @transform_2, window_bounds = array<i64: 1, 64>}, {pipeline_mode = #tpu.pipeline_mode<synchronous>, transform_indices = @transform_3, window_bounds = array<i64: 64, 4>}, {pipeline_mode = #tpu.pipeline_mode<synchronous>, transform_indices = @transform_4, window_bounds = array<i64: 1, 4>}, {transform_indices = @transform_5, window_bounds = array<i64: 8, 4>}]} {
    %c0 = arith.constant 0 : index
    %c0_0 = arith.constant 0 : index
    %0 = vector.load %arg1[%c0, %c0_0] : memref<8x8xf32, #tpu.memory_space<vmem>>, vector<8x8xf32>
    %c0_1 = arith.constant 0 : index
    %c0_2 = arith.constant 0 : index
    %1 = vector.load %arg2[%c0_1, %c0_2] : memref<8x64xf32, #tpu.memory_space<vmem>>, vector<8x64xf32>
    %cst = arith.constant dense<0.000000e+00> : vector<8x64xf32>
    %2 = tpu.matmul %0, %1, %cst {dimension_numbers = #tpu.dot_dimension_numbers<[1], [0], [0], [1], [0, 0, 1, 1], [], []>, precision = #tpu.contract_precision<fp32>} : vector<8x8xf32>, vector<8x64xf32>, vector<8x64xf32> -> vector<8x64xf32>
    %c0_3 = arith.constant 0 : index
    %c0_4 = arith.constant 0 : index
    %3 = vector.load %arg3[%c0_3, %c0_4] : memref<1x64xf32, #tpu.memory_space<vmem>>, vector<1x64xf32>
    %4 = vector.broadcast %3 : vector<1x64xf32> to vector<8x64xf32>
    %5 = arith.addf %2, %4 : vector<8x64xf32>
    %6 = math.tanh %5 : vector<8x64xf32>
    %c0_5 = arith.constant 0 : index
    %c0_6 = arith.constant 0 : index
    %7 = vector.load %arg4[%c0_5, %c0_6] : memref<64x4xf32, #tpu.memory_space<vmem>>, vector<64x4xf32>
    %cst_7 = arith.constant dense<0.000000e+00> : vector<8x4xf32>
    %8 = tpu.matmul %6, %7, %cst_7 {dimension_numbers = #tpu.dot_dimension_numbers<[1], [0], [0], [1], [0, 0, 1, 1], [], []>, precision = #tpu.contract_precision<fp32>} : vector<8x64xf32>, vector<64x4xf32>, vector<8x4xf32> -> vector<8x4xf32>
    %c0_8 = arith.constant 0 : index
    %c0_9 = arith.constant 0 : index
    %9 = vector.load %arg5[%c0_8, %c0_9] : memref<1x4xf32, #tpu.memory_space<vmem>>, vector<1x4xf32>
    %10 = vector.broadcast %9 : vector<1x4xf32> to vector<8x4xf32>
    %11 = arith.addf %8, %10 : vector<8x4xf32>
    %c0_10 = arith.constant 0 : index
    %c0_11 = arith.constant 0 : index
    %12 = vector.load %arg6[%c0_10, %c0_11] : memref<8x4xf32, #tpu.memory_space<vmem>>, vector<8x4xf32>
    tpu.vector_store %arg6[%c0_10, %c0_11], %11 {strides = array<i32>} : memref<8x4xf32, #tpu.memory_space<vmem>>, vector<8x4xf32>,
    return
  }
  func.func @transform_0(%arg0: i32) -> (i32, i32) {
    %c0_i32 = arith.constant 0 : i32
    %c0_i32_0 = arith.constant 0 : i32
    return %arg0, %c0_i32 : i32, i32
  }
  func.func @transform_1(%arg0: i32) -> (i32, i32) {
    %c0_i32 = arith.constant 0 : i32
    %c0_i32_0 = arith.constant 0 : i32
    %c0_i32_1 = arith.constant 0 : i32
    return %c0_i32, %c0_i32_0 : i32, i32
  }
  func.func @transform_2(%arg0: i32) -> (i32, i32) {
    %c0_i32 = arith.constant 0 : i32
    %c0_i32_0 = arith.constant 0 : i32
    %c0_i32_1 = arith.constant 0 : i32
    return %c0_i32, %c0_i32_0 : i32, i32
  }
  func.func @transform_3(%arg0: i32) -> (i32, i32) {
    %c0_i32 = arith.constant 0 : i32
    %c0_i32_0 = arith.constant 0 : i32
    %c0_i32_1 = arith.constant 0 : i32
    return %c0_i32, %c0_i32_0 : i32, i32
  }
  func.func @transform_4(%arg0: i32) -> (i32, i32) {
    %c0_i32 = arith.constant 0 : i32
    %c0_i32_0 = arith.constant 0 : i32
    %c0_i32_1 = arith.constant 0 : i32
    return %c0_i32, %c0_i32_0 : i32, i32
  }
  func.func @transform_5(%arg0: i32) -> (i32, i32) {
    %c0_i32 = arith.constant 0 : i32
    %c0_i32_0 = arith.constant 0 : i32
    return %arg0, %c0_i32 : i32, i32
  }
}

</mosaic_0001>

<llo_original>
// kernel: tpu_custom_call.1
$region0: #{tpu_custom_call.1}
  #allocation0 [shape = 'u32[]', space=smem, size = 0x4, offset = 0x4, fixed_abs, tag = 'smem constant byte address 0x4 - core index']
  #allocation1 [shape = 'u32[72,128]{1,0:T(1,128)}', space=vmem, size = 0x9000, scoped, tag = 'internal scratch']
  %s0 = inlined_call_operand.vmem [shape: f32[2,8], index: 0, kind: input, shape index: {}]
  %s1 = inlined_call_operand.vmem [shape: f32[8,64], index: 1, kind: input, shape index: {}]
  %s2 = inlined_call_operand.vmem [shape: f32[1,64], index: 2, kind: input, shape index: {}]
  %s3 = inlined_call_operand.vmem [shape: f32[64,4], index: 3, kind: input, shape index: {}]
  %s4 = inlined_call_operand.vmem [shape: f32[1,4], index: 4, kind: input, shape index: {}]
  %s5 = inlined_call_operand.hbm [shape: f32[2,4], index: 5, kind: output, shape index: {}]
  %s6 = sld [smem:[#allocation0]]
  $region30: #{tpu_custom_call.1} parent=0
    _
  %s8 = ssub.s32 1, %s6
  %s9 = scalar_select 0, %s8, %s6
  $region1: #{tpu_custom_call.1} parent=0
    #allocation2 [shape = 'u8[4096]{0}', space=vmem, size = 0x1000, scoped, tag = 'output window, operand 0, single buffered']
    #allocation3 [shape = 's32[1]{0}', space=sflag, size = 0x4, scoped, tag = 'scoped memory for tpu_custom_call.1']
    %10 = vsyncpa [#allocation3], 0
    // Predicated region
    $region2: #{tpu_custom_call.1} parent=1 // pred_check
      _
    $region3: #{tpu_custom_call.1} parent=1 // pred_check_branch
      %12 = sbr.rel (0) target = $region5
    $region4: #{tpu_custom_call.1} parent=1 // pred_region
      _
    $region5: #{tpu_custom_call.1} parent=1 // pred_fallthru
      _
    // Predicated region
    $region6: #{tpu_custom_call.1} parent=1 // pred_check
      _
    $region7: #{tpu_custom_call.1} parent=1 // pred_check_branch
      %14 = sbr.rel (0) target = $region9
    $region8: #{tpu_custom_call.1} parent=1 // pred_region
      _
    $region9: #{tpu_custom_call.1} parent=1 // pred_fallthru
      _
    // Predicated region
    $region10: #{tpu_custom_call.1} parent=1 // pred_check
      _
    $region11: #{tpu_custom_call.1} parent=1 // pred_check_branch
      %16 = sbr.rel (0) target = $region13
    $region12: #{tpu_custom_call.1} parent=1 // pred_region
      _
    $region13: #{tpu_custom_call.1} parent=1 // pred_fallthru
      _
    // Predicated region
    $region14: #{tpu_custom_call.1} parent=1 // pred_check
      _
    $region15: #{tpu_custom_call.1} parent=1 // pred_check_branch
      %18 = sbr.rel (0) target = $region17
    $region16: #{tpu_custom_call.1} parent=1 // pred_region
      _
    $region17: #{tpu_custom_call.1} parent=1 // pred_fallthru
      _
    // Predicated region
    $region18: #{tpu_custom_call.1} parent=1 // pred_check
      _
    $region19: #{tpu_custom_call.1} parent=1 // pred_check_branch
      %20 = sbr.rel (0) target = $region21
    $region20: #{tpu_custom_call.1} parent=1 // pred_region
      _
    $region21: #{tpu_custom_call.1} parent=1 // pred_fallthru
      _
    %v21 = vld [vmem:[%s0] sm:$0xff]
    %v22 = vld [vmem:[%s1] sm:$0xff]
    %v23 = vld [vmem:[%s2] sm:$0x1]
    %v25 = vperm.slane %v23, 0
    %vm27 = vcmask 64512
    %v29 = vsel %vm27, %v21, 0
    %31 = vmatpush.msra.mxu0 0.0
    %32 = vmatpush.msra.mxu0 0.0
    %33 = vmatpush.msra.mxu0 0.0
    %34 = vmatpush.msra.mxu0 0.0
    %35 = vmatpush.msra.mxu0 0.0
    %36 = vmatpush.msra.mxu0 0.0
    %37 = vmatpush.msra.mxu0 0.0
    %38 = vmatpush.msra.mxu0 0.0
    %39 = vmatpush.msra.mxu0 0.0
    %40 = vmatpush.msra.mxu0 0.0
    %41 = vmatpush.msra.mxu0 0.0
    %42 = vmatpush.msra.mxu0 0.0
    %43 = vmatpush.msra.mxu0 0.0
    %44 = vmatpush.msra.mxu0 0.0
    %45 = vmatpush.msra.mxu0 0.0
    %v46 = vand.u32 %v22, 4294901760
    %47 = vmatpush.msra.mxu0 %v46
    %v48 = vand.u32 %v29, 4294901760
    %v49 = vsub.f32 %v29, %v48
    %v50 = vand.u32 %v49, 4294901760
    %v51 = vsub.f32 %v49, %v50
    %v52 = vand.u32 %v51, 4294901760
    %53 = vmatmul.f32.gmra.mxu0 %v52
    %v54 = vpop.f32.mrf.mxu0
    %v55 = vadd.f32 %v25, %v54
    %56 = vdwg.mxu0
    %57 = vmatpush.msra.mxu0 0.0
    %58 = vmatpush.msra.mxu0 0.0
    %59 = vmatpush.msra.mxu0 0.0
    %60 = vmatpush.msra.mxu0 0.0
    %61 = vmatpush.msra.mxu0 0.0
    %62 = vmatpush.msra.mxu0 0.0
    %63 = vmatpush.msra.mxu0 0.0
    %64 = vmatpush.msra.mxu0 0.0
    %65 = vmatpush.msra.mxu0 0.0
    %66 = vmatpush.msra.mxu0 0.0
    %67 = vmatpush.msra.mxu0 0.0
    %68 = vmatpush.msra.mxu0 0.0
    %69 = vmatpush.msra.mxu0 0.0
    %70 = vmatpush.msra.mxu0 0.0
    %71 = vmatpush.msra.mxu0 0.0
    %v72 = vand.u32 %v22, 4294901760
    %v73 = vsub.f32 %v22, %v72
    %v74 = vand.u32 %v73, 4294901760
    %v75 = vsub.f32 %v73, %v74
    %v76 = vand.u32 %v75, 4294901760
    %77 = vmatpush.msra.mxu0 %v76
    %v78 = vand.u32 %v29, 4294901760
    %79 = vmatmul.f32.gmra.mxu0 %v78
    %v80 = vpop.f32.mrf.mxu0
    %v81 = vadd.f32 %v55, %v80
    %82 = vdwg.mxu0
    %83 = vmatpush.msra.mxu0 0.0
    %84 = vmatpush.msra.mxu0 0.0
    %85 = vmatpush.msra.mxu0 0.0
    %86 = vmatpush.msra.mxu0 0.0
    %87 = vmatpush.msra.mxu0 0.0
    %88 = vmatpush.msra.mxu0 0.0
    %89 = vmatpush.msra.mxu0 0.0
    %90 = vmatpush.msra.mxu0 0.0
    %91 = vmatpush.msra.mxu0 0.0
    %92 = vmatpush.msra.mxu0 0.0
    %93 = vmatpush.msra.mxu0 0.0
    %94 = vmatpush.msra.mxu0 0.0
    %95 = vmatpush.msra.mxu0 0.0
    %96 = vmatpush.msra.mxu0 0.0
    %97 = vmatpush.msra.mxu0 0.0
    %v98 = vand.u32 %v22, 4294901760
    %v99 = vsub.f32 %v22, %v98
    %100 = vmatpush.msra.mxu0 %v99
    %v101 = vand.u32 %v29, 4294901760
    %v102 = vsub.f32 %v29, %v101
    %103 = vmatmul.f32.gmra.mxu0 %v102
    %v104 = vpop.f32.mrf.mxu0
    %v105 = vadd.f32 %v81, %v104
    %106 = vdwg.mxu0
    %107 = vmatpush.msra.mxu0 0.0
    %108 = vmatpush.msra.mxu0 0.0
    %109 = vmatpush.msra.mxu0 0.0
    %110 = vmatpush.msra.mxu0 0.0
    %111 = vmatpush.msra.mxu0 0.0
    %112 = vmatpush.msra.mxu0 0.0
    %113 = vmatpush.msra.mxu0 0.0
    %114 = vmatpush.msra.mxu0 0.0
    %115 = vmatpush.msra.mxu0 0.0
    %116 = vmatpush.msra.mxu0 0.0
    %117 = vmatpush.msra.mxu0 0.0
    %118 = vmatpush.msra.mxu0 0.0
    %119 = vmatpush.msra.mxu0 0.0
    %120 = vmatpush.msra.mxu0 0.0
    %121 = vmatpush.msra.mxu0 0.0
    %v122 = vand.u32 %v22, 4294901760
    %123 = vmatpush.msra.mxu0 %v122
    %v124 = vand.u32 %v29, 4294901760
    %v125 = vsub.f32 %v29, %v124
    %v126 = vand.u32 %v125, 4294901760
    %127 = vmatmul.f32.gmra.mxu0 %v126
    %v128 = vpop.f32.mrf.mxu0
    %v129 = vadd.f32 %v105, %v128
    %130 = vdwg.mxu0
    %131 = vmatpush.msra.mxu0 0.0
    %132 = vmatpush.msra.mxu0 0.0
    %133 = vmatpush.msra.mxu0 0.0
    %134 = vmatpush.msra.mxu0 0.0
    %135 = vmatpush.msra.mxu0 0.0
    %136 = vmatpush.msra.mxu0 0.0
    %137 = vmatpush.msra.mxu0 0.0
    %138 = vmatpush.msra.mxu0 0.0
    %139 = vmatpush.msra.mxu0 0.0
    %140 = vmatpush.msra.mxu0 0.0
    %141 = vmatpush.msra.mxu0 0.0
    %142 = vmatpush.msra.mxu0 0.0
    %143 = vmatpush.msra.mxu0 0.0
    %144 = vmatpush.msra.mxu0 0.0
    %145 = vmatpush.msra.mxu0 0.0
    %v146 = vand.u32 %v22, 4294901760
    %v147 = vsub.f32 %v22, %v146
    %v148 = vand.u32 %v147, 4294901760
    %149 = vmatpush.msra.mxu0 %v148
    %v150 = vand.u32 %v29, 4294901760
    %151 = vmatmul.f32.gmra.mxu0 %v150
    %v152 = vpop.f32.mrf.mxu0
    %v153 = vadd.f32 %v129, %v152
    %154 = vdwg.mxu0
    %155 = vmatpush.msra.mxu0 0.0
    %156 = vmatpush.msra.mxu0 0.0
    %157 = vmatpush.msra.mxu0 0.0
    %158 = vmatpush.msra.mxu0 0.0
    %159 = vmatpush.msra.mxu0 0.0
    %160 = vmatpush.msra.mxu0 0.0
    %161 = vmatpush.msra.mxu0 0.0
    %162 = vmatpush.msra.mxu0 0.0
    %163 = vmatpush.msra.mxu0 0.0
    %164 = vmatpush.msra.mxu0 0.0
    %165 = vmatpush.msra.mxu0 0.0
    %166 = vmatpush.msra.mxu0 0.0
    %167 = vmatpush.msra.mxu0 0.0
    %168 = vmatpush.msra.mxu0 0.0
    %169 = vmatpush.msra.mxu0 0.0
    %v170 = vand.u32 %v22, 4294901760
    %171 = vmatpush.msra.mxu0 %v170
    %v172 = vand.u32 %v29, 4294901760
    %173 = vmatmul.f32.gmra.mxu0 %v172
    %v174 = vpop.f32.mrf.mxu0
    %v175 = vadd.f32 %v153, %v174
    %176 = vdwg.mxu0
    %v177 = vtanh.pop %v175
    %v178 = vld [vmem:[%s3] sm:$0xff]
    %v179 = vld [vmem:[%s3 + $0x8] sm:$0xff]
    %v180 = vld [vmem:[%s3 + $0x10] sm:$0xff]
    %v181 = vld [vmem:[%s3 + $0x18] sm:$0xff]
    %v182 = vld [vmem:[%s3 + $0x20] sm:$0xff]
    %v183 = vld [vmem:[%s3 + $0x28] sm:$0xff]
    %v184 = vld [vmem:[%s3 + $0x30] sm:$0xff]
    %v185 = vld [vmem:[%s3 + $0x38] sm:$0xff]
    %v186 = vld [vmem:[%s4] sm:$0x1]
    %v188 = vperm.slane %v186, 0
    %vm190 = vcmask 523264
    %v192 = vsel %vm190, %v177, 0
    %194 = vmatpush.msra.mxu0 0.0
    %195 = vmatpush.msra.mxu0 0.0
    %196 = vmatpush.msra.mxu0 0.0
    %197 = vmatpush.msra.mxu0 0.0
    %198 = vmatpush.msra.mxu0 0.0
    %199 = vmatpush.msra.mxu0 0.0
    %200 = vmatpush.msra.mxu0 0.0
    %201 = vmatpush.msra.mxu0 0.0
    %v202 = vand.u32 %v185, 4294901760
    %203 = vmatpush.msra.mxu0 %v202
    %v204 = vand.u32 %v184, 4294901760
    %205 = vmatpush.msra.mxu0 %v204
    %v206 = vand.u32 %v183, 4294901760
    %207 = vmatpush.msra.mxu0 %v206
    %v208 = vand.u32 %v182, 4294901760
    %209 = vmatpush.msra.mxu0 %v208
    %v210 = vand.u32 %v181, 4294901760
    %211 = vmatpush.msra.mxu0 %v210
    %v212 = vand.u32 %v180, 4294901760
    %213 = vmatpush.msra.mxu0 %v212
    %v214 = vand.u32 %v179, 4294901760
    %215 = vmatpush.msra.mxu0 %v214
    %v216 = vand.u32 %v178, 4294901760
    %217 = vmatpush.msra.mxu0 %v216
    %v218 = vand.u32 %v192, 4294901760
    %v219 = vsub.f32 %v192, %v218
    %v220 = vand.u32 %v219, 4294901760
    %v221 = vsub.f32 %v219, %v220
    %v222 = vand.u32 %v221, 4294901760
    %223 = vmatmul.f32.gmra.mxu0 %v222
    %v224 = vpop.f32.mrf.mxu0
    %v225 = vadd.f32 %v188, %v224
    %226 = vdwg.mxu0
    %227 = vmatpush.msra.mxu0 0.0
    %228 = vmatpush.msra.mxu0 0.0
    %229 = vmatpush.msra.mxu0 0.0
    %230 = vmatpush.msra.mxu0 0.0
    %231 = vmatpush.msra.mxu0 0.0
    %232 = vmatpush.msra.mxu0 0.0
    %233 = vmatpush.msra.mxu0 0.0
    %234 = vmatpush.msra.mxu0 0.0
    %v235 = vand.u32 %v185, 4294901760
    %v236 = vsub.f32 %v185, %v235
    %v237 = vand.u32 %v236, 4294901760
    %v238 = vsub.f32 %v236, %v237
    %v239 = vand.u32 %v238, 4294901760
    %240 = vmatpush.msra.mxu0 %v239
    %v241 = vand.u32 %v184, 4294901760
    %v242 = vsub.f32 %v184, %v241
    %v243 = vand.u32 %v242, 4294901760
    %v244 = vsub.f32 %v242, %v243
    %v245 = vand.u32 %v244, 4294901760
    %246 = vmatpush.msra.mxu0 %v245
    %v247 = vand.u32 %v183, 4294901760
    %v248 = vsub.f32 %v183, %v247
    %v249 = vand.u32 %v248, 4294901760
    %v250 = vsub.f32 %v248, %v249
    %v251 = vand.u32 %v250, 4294901760
    %252 = vmatpush.msra.mxu0 %v251
    %v253 = vand.u32 %v182, 4294901760
    %v254 = vsub.f32 %v182, %v253
    %v255 = vand.u32 %v254, 4294901760
    %v256 = vsub.f32 %v254, %v255
    %v257 = vand.u32 %v256, 4294901760
    %258 = vmatpush.msra.mxu0 %v257
    %v259 = vand.u32 %v181, 4294901760
    %v260 = vsub.f32 %v181, %v259
    %v261 = vand.u32 %v260, 4294901760
    %v262 = vsub.f32 %v260, %v261
    %v263 = vand.u32 %v262, 4294901760
    %264 = vmatpush.msra.mxu0 %v263
    %v265 = vand.u32 %v180, 4294901760
    %v266 = vsub.f32 %v180, %v265
    %v267 = vand.u32 %v266, 4294901760
    %v268 = vsub.f32 %v266, %v267
    %v269 = vand.u32 %v268, 4294901760
    %270 = vmatpush.msra.mxu0 %v269
    %v271 = vand.u32 %v179, 4294901760
    %v272 = vsub.f32 %v179, %v271
    %v273 = vand.u32 %v272, 4294901760
    %v274 = vsub.f32 %v272, %v273
    %v275 = vand.u32 %v274, 4294901760
    %276 = vmatpush.msra.mxu0 %v275
    %v277 = vand.u32 %v178, 4294901760
    %v278 = vsub.f32 %v178, %v277
    %v279 = vand.u32 %v278, 4294901760
    %v280 = vsub.f32 %v278, %v279
    %v281 = vand.u32 %v280, 4294901760
    %282 = vmatpush.msra.mxu0 %v281
    %v283 = vand.u32 %v192, 4294901760
    %284 = vmatmul.f32.gmra.mxu0 %v283
    %v285 = vpop.f32.mrf.mxu0
    %v286 = vadd.f32 %v225, %v285
    %287 = vdwg.mxu0
    %288 = vmatpush.msra.mxu0 0.0
    %289 = vmatpush.msra.mxu0 0.0
    %290 = vmatpush.msra.mxu0 0.0
    %291 = vmatpush.msra.mxu0 0.0
    %292 = vmatpush.msra.mxu0 0.0
    %293 = vmatpush.msra.mxu0 0.0
    %294 = vmatpush.msra.mxu0 0.0
    %295 = vmatpush.msra.mxu0 0.0
    %v296 = vand.u32 %v185, 4294901760
    %v297 = vsub.f32 %v185, %v296
    %298 = vmatpush.msra.mxu0 %v297
    %v299 = vand.u32 %v184, 4294901760
    %v300 = vsub.f32 %v184, %v299
    %301 = vmatpush.msra.mxu0 %v300
    %v302 = vand.u32 %v183, 4294901760
    %v303 = vsub.f32 %v183, %v302
    %304 = vmatpush.msra.mxu0 %v303
    %v305 = vand.u32 %v182, 4294901760
    %v306 = vsub.f32 %v182, %v305
    %307 = vmatpush.msra.mxu0 %v306
    %v308 = vand.u32 %v181, 4294901760
    %v309 = vsub.f32 %v181, %v308
    %310 = vmatpush.msra.mxu0 %v309
    %v311 = vand.u32 %v180, 4294901760
    %v312 = vsub.f32 %v180, %v311
    %313 = vmatpush.msra.mxu0 %v312
    %v314 = vand.u32 %v179, 4294901760
    %v315 = vsub.f32 %v179, %v314
    %316 = vmatpush.msra.mxu0 %v315
    %v317 = vand.u32 %v178, 4294901760
    %v318 = vsub.f32 %v178, %v317
    %319 = vmatpush.msra.mxu0 %v318
    %v320 = vand.u32 %v192, 4294901760
    %v321 = vsub.f32 %v192, %v320
    %322 = vmatmul.f32.gmra.mxu0 %v321
    %v323 = vpop.f32.mrf.mxu0
    %v324 = vadd.f32 %v286, %v323
    %325 = vdwg.mxu0
    %326 = vmatpush.msra.mxu0 0.0
    %327 = vmatpush.msra.mxu0 0.0
    %328 = vmatpush.msra.mxu0 0.0
    %329 = vmatpush.msra.mxu0 0.0
    %330 = vmatpush.msra.mxu0 0.0
    %331 = vmatpush.msra.mxu0 0.0
    %332 = vmatpush.msra.mxu0 0.0
    %333 = vmatpush.msra.mxu0 0.0
    %v334 = vand.u32 %v185, 4294901760
    %335 = vmatpush.msra.mxu0 %v334
    %v336 = vand.u32 %v184, 4294901760
    %337 = vmatpush.msra.mxu0 %v336
    %v338 = vand.u32 %v183, 4294901760
    %339 = vmatpush.msra.mxu0 %v338
    %v340 = vand.u32 %v182, 4294901760
    %341 = vmatpush.msra.mxu0 %v340
    %v342 = vand.u32 %v181, 4294901760
    %343 = vmatpush.msra.mxu0 %v342
    %v344 = vand.u32 %v180, 4294901760
    %345 = vmatpush.msra.mxu0 %v344
    %v346 = vand.u32 %v179, 4294901760
    %347 = vmatpush.msra.mxu0 %v346
    %v348 = vand.u32 %v178, 4294901760
    %349 = vmatpush.msra.mxu0 %v348
    %v350 = vand.u32 %v192, 4294901760
    %v351 = vsub.f32 %v192, %v350
    %v352 = vand.u32 %v351, 4294901760
    %353 = vmatmul.f32.gmra.mxu0 %v352
    %v354 = vpop.f32.mrf.mxu0
    %v355 = vadd.f32 %v324, %v354
    %356 = vdwg.mxu0
    %357 = vmatpush.msra.mxu0 0.0
    %358 = vmatpush.msra.mxu0 0.0
    %359 = vmatpush.msra.mxu0 0.0
    %360 = vmatpush.msra.mxu0 0.0
    %361 = vmatpush.msra.mxu0 0.0
    %362 = vmatpush.msra.mxu0 0.0
    %363 = vmatpush.msra.mxu0 0.0
    %364 = vmatpush.msra.mxu0 0.0
    %v365 = vand.u32 %v185, 4294901760
    %v366 = vsub.f32 %v185, %v365
    %v367 = vand.u32 %v366, 4294901760
    %368 = vmatpush.msra.mxu0 %v367
    %v369 = vand.u32 %v184, 4294901760
    %v370 = vsub.f32 %v184, %v369
    %v371 = vand.u32 %v370, 4294901760
    %372 = vmatpush.msra.mxu0 %v371
    %v373 = vand.u32 %v183, 4294901760
    %v374 = vsub.f32 %v183, %v373
    %v375 = vand.u32 %v374, 4294901760
    %376 = vmatpush.msra.mxu0 %v375
    %v377 = vand.u32 %v182, 4294901760
    %v378 = vsub.f32 %v182, %v377
    %v379 = vand.u32 %v378, 4294901760
    %380 = vmatpush.msra.mxu0 %v379
    %v381 = vand.u32 %v181, 4294901760
    %v382 = vsub.f32 %v181, %v381
    %v383 = vand.u32 %v382, 4294901760
    %384 = vmatpush.msra.mxu0 %v383
    %v385 = vand.u32 %v180, 4294901760
    %v386 = vsub.f32 %v180, %v385
    %v387 = vand.u32 %v386, 4294901760
    %388 = vmatpush.msra.mxu0 %v387
    %v389 = vand.u32 %v179, 4294901760
    %v390 = vsub.f32 %v179, %v389
    %v391 = vand.u32 %v390, 4294901760
    %392 = vmatpush.msra.mxu0 %v391
    %v393 = vand.u32 %v178, 4294901760
    %v394 = vsub.f32 %v178, %v393
    %v395 = vand.u32 %v394, 4294901760
    %396 = vmatpush.msra.mxu0 %v395
    %v397 = vand.u32 %v192, 4294901760
    %398 = vmatmul.f32.gmra.mxu0 %v397
    %v399 = vpop.f32.mrf.mxu0
    %v400 = vadd.f32 %v355, %v399
    %401 = vdwg.mxu0
    %402 = vmatpush.msra.mxu0 0.0
    %403 = vmatpush.msra.mxu0 0.0
    %404 = vmatpush.msra.mxu0 0.0
    %405 = vmatpush.msra.mxu0 0.0
    %406 = vmatpush.msra.mxu0 0.0
    %407 = vmatpush.msra.mxu0 0.0
    %408 = vmatpush.msra.mxu0 0.0
    %409 = vmatpush.msra.mxu0 0.0
    %v410 = vand.u32 %v185, 4294901760
    %411 = vmatpush.msra.mxu0 %v410
    %v412 = vand.u32 %v184, 4294901760
    %413 = vmatpush.msra.mxu0 %v412
    %v414 = vand.u32 %v183, 4294901760
    %415 = vmatpush.msra.mxu0 %v414
    %v416 = vand.u32 %v182, 4294901760
    %417 = vmatpush.msra.mxu0 %v416
    %v418 = vand.u32 %v181, 4294901760
    %419 = vmatpush.msra.mxu0 %v418
    %v420 = vand.u32 %v180, 4294901760
    %421 = vmatpush.msra.mxu0 %v420
    %v422 = vand.u32 %v179, 4294901760
    %423 = vmatpush.msra.mxu0 %v422
    %v424 = vand.u32 %v178, 4294901760
    %425 = vmatpush.msra.mxu0 %v424
    %v426 = vand.u32 %v192, 4294901760
    %427 = vmatmul.f32.gmra.mxu0 %v426
    %v428 = vpop.f32.mrf.mxu0
    %v429 = vadd.f32 %v400, %v428
    %430 = vdwg.mxu0
    %vm431 = vcmask 31744
    %432 = vst.msk [vmem:[#allocation2] sm:$0xff] %vm431, %v429
    // Predicated region
    $region22: #{tpu_custom_call.1} parent=1 // pred_check
      _
    $region23: #{tpu_custom_call.1} parent=1 // pred_check_branch
      %434 = sbr.rel (0) target = $region25
    $region24: #{tpu_custom_call.1} parent=1 // pred_region
      %436 = vsyncadd [#allocation3], 96
      %s437 = sshll.u32 [#allocation2], 4
      %s438 = int_to_ptr.vmem [resolvable:$true] %s437
      %s439 = sshll.u32 %s5, 4
      %s440 = int_to_ptr.hbm [resolvable:$true] %s439
      %445 = dma.vmem_to_hbm [thread:$0]  %s438, 32, %s440, [#allocation3], 32, 32, 2
    $region25: #{tpu_custom_call.1} parent=1 // pred_fallthru
      _
    // Predicated region
    $region26: #{tpu_custom_call.1} parent=1 // pred_check
      _
    $region27: #{tpu_custom_call.1} parent=1 // pred_check_branch
      %447 = sbr.rel (0) target = $region29
    $region28: #{tpu_custom_call.1} parent=1 // pred_region
      %449 = dma.done [#allocation3], 128
    $region29: #{tpu_custom_call.1} parent=1 // pred_fallthru
      _
    %450 = vsyncpa [#allocation3], 1

</llo_original>
